<compile_context>
chip_gen: v5e
topology: v5e:2x2
jax: 0.10.0
libtpu: 0.0.40
codegen_flags: <defaults>
</compile_context>

<pallas_src>
import functools

import jax
import jax.numpy as jnp
from jax.experimental import pallas as pl
from jax.experimental.pallas import tpu as pltpu


def _round_up(x, m):
    return ((x + m - 1) // m) * m


def _linear_hswish_kernel(x_ref, w_ref, b_ref, o_ref):
    # x_ref: (TM, K*pack), w_ref: (K*pack, N*pack) block-diagonal, b_ref: (1, N*pack)
    l1 = jnp.dot(x_ref[...], w_ref[...],
                 preferred_element_type=jnp.float32) + b_ref[...]
    # l2 = l1 * (clamp(l1, 0, 6) + 3);  l3 = l2 / 6
    o_ref[...] = (l1 * (jnp.clip(l1, 0.0, 6.0) + 3.0) * (1.0 / 6.0)
                  ).astype(o_ref.dtype)


def pack_params(w, b, *, pack=2):
    """One-time (parameter-load time) prep.

    w: [N, K] (PyTorch out,in layout), b: [N].
    Returns (w_packed [K*pack, N*pack] block-diagonal of W^T, b_packed [1, N*pack]).
    Off-diagonal blocks are exact zeros, so results match the unpacked matmul.
    """
    wt = jnp.asarray(w).T                                       # (K, N)
    w_packed = jnp.kron(jnp.eye(pack, dtype=wt.dtype), wt)      # (K*pack, N*pack)
    b_packed = jnp.tile(jnp.asarray(b).reshape(1, -1), (1, pack))
    return w_packed, b_packed


def _linear_hswish_packed(x, w_packed, b_packed, *, tm=1024):
    """x: [M, K] f32; w_packed/b_packed from pack_params()."""
    M, K = x.shape
    KP, NP = w_packed.shape
    pack = KP // K
    N = NP // pack

    # Pad M to a multiple of `pack`, then lane-pack via a free row-major reshape.
    M_pad = _round_up(M, pack)
    if M_pad != M:
        x = jnp.pad(x, ((0, M_pad - M), (0, 0)))
    xp = x.reshape(M_pad // pack, KP)            # (MP, K*pack) — lane-dense

    MP = xp.shape[0]
    tm_eff = min(tm, _round_up(MP, 8))           # row tile (multiple of 8 sublanes)
    grid = (pl.cdiv(MP, tm_eff),)

    out_p = pl.pallas_call(
        _linear_hswish_kernel,
        out_shape=jax.ShapeDtypeStruct((MP, NP), x.dtype),
        grid=grid,
        in_specs=[
            pl.BlockSpec((tm_eff, KP), lambda i: (i, 0)),   # streamed x row tiles
            pl.BlockSpec((KP, NP), lambda i: (0, 0)),       # weight: resident
            pl.BlockSpec((1, NP), lambda i: (0, 0)),        # bias: resident
        ],
        out_specs=pl.BlockSpec((tm_eff, NP), lambda i: (i, 0)),
        compiler_params=pltpu.CompilerParams(
            dimension_semantics=("parallel",)),             # megacore on v7x
    )(xp, w_packed, b_packed)

    out = out_p.reshape(M_pad, N)
    if M_pad != M:
        out = out[:M]
    return out


# Jitted per-call wrapper (pad / reshape / slice glue gets fused by XLA).
linear_hswish_packed = jax.jit(_linear_hswish_packed, static_argnames=("tm",))


def linear_hswish(x, w, b, *, pack=2, tm=1024):
    """Convenience wrapper: packs params per call (prefer pack_params() once)."""
    w_packed, b_packed = pack_params(w, b, pack=pack)
    return linear_hswish_packed(x, w_packed, b_packed, tm=tm)


def _reference(x, w, b):
    l1 = x @ w.T + b
    return l1 * (jnp.clip(l1, 0.0, 6.0) + 3.0) / 6.0


if __name__ == "__main__":
    key = jax.random.PRNGKey(0)
    kx, kw, kb, kx2, kx3 = jax.random.split(key, 5)

    IN, OUT = 64, 64
    bound = 1.0 / jnp.sqrt(jnp.float32(IN))
    w = jax.random.uniform(kw, (OUT, IN), dtype=jnp.float32,
                           minval=-bound, maxval=bound)
    b = jax.random.uniform(kb, (OUT,), dtype=jnp.float32,
                           minval=-bound, maxval=bound)

    # Params packed once (as they would be at model-load time).
    w_p2, b_p2 = pack_params(w, b, pack=2)   # 128-lane packing (all generations)
    w_p4, b_p4 = pack_params(w, b, pack=4)   # 256-lane packing (v6e / v7x MXU)

    # 1) Small shape consistent with the module's forward (batch of 8 rows).
    M = 8
    x = jax.random.normal(kx, (M, IN), dtype=jnp.float32)
    out = linear_hswish_packed(x, w_p2, b_p2)
    jax.block_until_ready(out)
    assert out.shape == (M, OUT)
    assert jnp.allclose(out, _reference(x, w, b), atol=1e-5, rtol=1e-5), \
        "mismatch vs reference (M=8, pack=2)"

    # 2) Odd M: exercises the pad-to-multiple-of-pack path.
    M2 = 33
    x2 = jax.random.normal(kx2, (M2, IN), dtype=jnp.float32)
    out2 = linear_hswish_packed(x2, w_p2, b_p2)
    jax.block_until_ready(out2)
    assert out2.shape == (M2, OUT)
    assert jnp.allclose(out2, _reference(x2, w, b), atol=1e-5, rtol=1e-5), \
        "mismatch vs reference (M=33, pack=2, padded)"

    # 3) Larger M with a small tile: exercises multi-step pipelined grid with a
    #    ragged last tile, in both the 128-lane and 256-lane packed layouts.
    M3 = 1030
    x3 = jax.random.normal(kx3, (M3, IN), dtype=jnp.float32)
    ref3 = _reference(x3, w, b)

    out3 = linear_hswish_packed(x3, w_p2, b_p2, tm=128)   # grid of 5, ragged last
    jax.block_until_ready(out3)
    assert jnp.allclose(out3, ref3, atol=1e-5, rtol=1e-5), \
        "mismatch vs reference (M=1030, pack=2, tiled)"

    out4 = linear_hswish_packed(x3, w_p4, b_p4, tm=64)    # grid of 5, ragged last
    jax.block_until_ready(out4)
    assert jnp.allclose(out4, ref3, atol=1e-5, rtol=1e-5), \
        "mismatch vs reference (M=1030, pack=4, tiled)"

    print("KERNEL_OK")
</pallas_src>

<mosaic_0001>
module attributes {stable_mosaic.version = 11 : i64} {
  func.func @_linear_hswish_kernel(%arg0: i32, %arg1: memref<8x128xf32, #tpu.memory_space<vmem>>, %arg2: memref<128x128xf32, #tpu.memory_space<vmem>>, %arg3: memref<1x128xf32, #tpu.memory_space<vmem>>, %arg4: memref<8x128xf32, #tpu.memory_space<vmem>>) attributes {dimension_semantics = [#tpu.dimension_semantics<parallel>], iteration_bounds = array<i64: 1>, scalar_prefetch = 0 : i64, scratch_operands = 0 : i64, tpu.core_type = #tpu.core_type<tc>, window_params = [{transform_indices = @transform_0, window_bounds = array<i64: 8, 128>}, {pipeline_mode = #tpu.pipeline_mode<synchronous>, transform_indices = @transform_1, window_bounds = array<i64: 128, 128>}, {pipeline_mode = #tpu.pipeline_mode<synchronous>, transform_indices = @transform_2, window_bounds = array<i64: 1, 128>}, {transform_indices = @transform_3, window_bounds = array<i64: 8, 128>}]} {
    %c0 = arith.constant 0 : index
    %c0_0 = arith.constant 0 : index
    %0 = vector.load %arg1[%c0, %c0_0] : memref<8x128xf32, #tpu.memory_space<vmem>>, vector<8x128xf32>
    %c0_1 = arith.constant 0 : index
    %c0_2 = arith.constant 0 : index
    %1 = vector.load %arg2[%c0_1, %c0_2] : memref<128x128xf32, #tpu.memory_space<vmem>>, vector<128x128xf32>
    %cst = arith.constant dense<0.000000e+00> : vector<8x128xf32>
    %2 = tpu.matmul %0, %1, %cst {dimension_numbers = #tpu.dot_dimension_numbers<[1], [0], [0], [1], [0, 0, 1, 1], [], []>} : vector<8x128xf32>, vector<128x128xf32>, vector<8x128xf32> -> vector<8x128xf32>
    %c0_3 = arith.constant 0 : index
    %c0_4 = arith.constant 0 : index
    %3 = vector.load %arg3[%c0_3, %c0_4] : memref<1x128xf32, #tpu.memory_space<vmem>>, vector<1x128xf32>
    %4 = vector.broadcast %3 : vector<1x128xf32> to vector<8x128xf32>
    %5 = arith.addf %2, %4 : vector<8x128xf32>
    %cst_5 = arith.constant 0.000000e+00 : f32
    %cst_6 = arith.constant 6.000000e+00 : f32
    %6 = vector.broadcast %cst_5 : f32 to vector<8x128xf32>
    %7 = arith.maximumf %6, %5 : vector<8x128xf32>
    %8 = vector.broadcast %cst_6 : f32 to vector<8x128xf32>
    %9 = arith.minimumf %8, %7 : vector<8x128xf32>
    %cst_7 = arith.constant 3.000000e+00 : f32
    %10 = vector.broadcast %cst_7 : f32 to vector<8x128xf32>
    %11 = arith.addf %9, %10 : vector<8x128xf32>
    %12 = arith.mulf %5, %11 : vector<8x128xf32>
    %cst_8 = arith.constant 0.166666672 : f32
    %13 = vector.broadcast %cst_8 : f32 to vector<8x128xf32>
    %14 = arith.mulf %12, %13 : vector<8x128xf32>
    %c0_9 = arith.constant 0 : index
    %c0_10 = arith.constant 0 : index
    %15 = vector.load %arg4[%c0_9, %c0_10] : memref<8x128xf32, #tpu.memory_space<vmem>>, vector<8x128xf32>
    tpu.vector_store %arg4[%c0_9, %c0_10], %14 {strides = array<i32>} : memref<8x128xf32, #tpu.memory_space<vmem>>, vector<8x128xf32>,
    return
  }
  func.func @transform_0(%arg0: i32) -> (i32, i32) {
    %c0_i32 = arith.constant 0 : i32
    %c0_i32_0 = arith.constant 0 : i32
    return %arg0, %c0_i32 : i32, i32
  }
  func.func @transform_1(%arg0: i32) -> (i32, i32) {
    %c0_i32 = arith.constant 0 : i32
    %c0_i32_0 = arith.constant 0 : i32
    %c0_i32_1 = arith.constant 0 : i32
    return %c0_i32, %c0_i32_0 : i32, i32
  }
  func.func @transform_2(%arg0: i32) -> (i32, i32) {
    %c0_i32 = arith.constant 0 : i32
    %c0_i32_0 = arith.constant 0 : i32
    %c0_i32_1 = arith.constant 0 : i32
    return %c0_i32, %c0_i32_0 : i32, i32
  }
  func.func @transform_3(%arg0: i32) -> (i32, i32) {
    %c0_i32 = arith.constant 0 : i32
    %c0_i32_0 = arith.constant 0 : i32
    return %arg0, %c0_i32 : i32, i32
  }
}

</mosaic_0001>

<llo_original>
// kernel: _linear_hswish_packed.1
$region0: #{_linear_hswish_packed.1}
  #allocation0 [shape = 'u32[]', space=smem, size = 0x4, offset = 0x4, fixed_abs, tag = 'smem constant byte address 0x4 - core index']
  #allocation1 [shape = 'u32[72,128]{1,0:T(1,128)}', space=vmem, size = 0x9000, scoped, tag = 'internal scratch']
  %s0 = inlined_call_operand.vmem [shape: f32[4,128], index: 0, kind: input, shape index: {}]
  %s1 = inlined_call_operand.hbm [shape: f32[128,128], index: 1, kind: input, shape index: {}]
  %s2 = inlined_call_operand.vmem [shape: f32[1,128], index: 2, kind: input, shape index: {}]
  %s3 = inlined_call_operand.vmem [shape: f32[4,128], index: 3, kind: output, shape index: {}]
  %s4 = sld [smem:[#allocation0]]
  $region56: #{_linear_hswish_packed.1} parent=0
    _
  %s6 = ssub.s32 1, %s4
  %s7 = scalar_select 0, %s6, %s4
  $region1: #{_linear_hswish_packed.1} parent=0
    #allocation2 [shape = 'u8[65536]{0}', space=vmem, size = 0x10000, scoped, tag = 'input window, operand 1, single buffered']
    #allocation3 [shape = 's32[1]{0}', space=sflag, size = 0x4, scoped, tag = 'scoped memory for _linear_hswish_packed.1']
    #allocation4 [shape = 'u8[4096]{0}', space=vmem, size = 0x1000, scoped, tag = 'output window, operand 0, single buffered']
    %8 = vsyncpa [#allocation3], 0
    // Predicated region
    $region2: #{_linear_hswish_packed.1} parent=1 // pred_check
      _
    $region3: #{_linear_hswish_packed.1} parent=1 // pred_check_branch
      %10 = sbr.rel (0) target = $region5
    $region4: #{_linear_hswish_packed.1} parent=1 // pred_region
      _
    $region5: #{_linear_hswish_packed.1} parent=1 // pred_fallthru
      _
    // Predicated region
    $region6: #{_linear_hswish_packed.1} parent=1 // pred_check
      _
    $region7: #{_linear_hswish_packed.1} parent=1 // pred_check_branch
      %12 = sbr.rel (0) target = $region9
    $region8: #{_linear_hswish_packed.1} parent=1 // pred_region
      %14 = vsyncadd [#allocation3], 0
      %s15 = sshll.u32 %s1, 4
      %s16 = int_to_ptr.hbm [resolvable:$true] %s15
      %s17 = sshll.u32 [#allocation2], 4
      %s18 = int_to_ptr.vmem [resolvable:$true] %s17
      %23 = dma.hbm_to_vmem [thread:$0]  %s16, 2048, %s18, [#allocation3], 128, 128, 8
    $region9: #{_linear_hswish_packed.1} parent=1 // pred_fallthru
      _
    // Predicated region
    $region10: #{_linear_hswish_packed.1} parent=1 // pred_check
      _
    $region11: #{_linear_hswish_packed.1} parent=1 // pred_check_branch
      %25 = sbr.rel (0) target = $region13
    $region12: #{_linear_hswish_packed.1} parent=1 // pred_region
      _
    $region13: #{_linear_hswish_packed.1} parent=1 // pred_fallthru
      _
    // Predicated region
    $region14: #{_linear_hswish_packed.1} parent=1 // pred_check
      _
    $region15: #{_linear_hswish_packed.1} parent=1 // pred_check_branch
      %27 = sbr.rel (0) target = $region17
    $region16: #{_linear_hswish_packed.1} parent=1 // pred_region
      %29 = dma.done [#allocation3], 2048
    $region17: #{_linear_hswish_packed.1} parent=1 // pred_fallthru
      _
    %v30 = vld [vmem:[%s0] sm:$0xff]
    %v31 = vld [vmem:[#allocation2] sm:$0xff]
    %v32 = vld [vmem:[#allocation2 + $0x8] sm:$0xff]
    %v33 = vld [vmem:[#allocation2 + $0x10] sm:$0xff]
    %v34 = vld [vmem:[#allocation2 + $0x18] sm:$0xff]
    %v35 = vld [vmem:[#allocation2 + $0x20] sm:$0xff]
    %v36 = vld [vmem:[#allocation2 + $0x28] sm:$0xff]
    %v37 = vld [vmem:[#allocation2 + $0x30] sm:$0xff]
    %v38 = vld [vmem:[#allocation2 + $0x38] sm:$0xff]
    %v39 = vld [vmem:[#allocation2 + $0x40] sm:$0xff]
    %v40 = vld [vmem:[#allocation2 + $0x48] sm:$0xff]
    %v41 = vld [vmem:[#allocation2 + $0x50] sm:$0xff]
    %v42 = vld [vmem:[#allocation2 + $0x58] sm:$0xff]
    %v43 = vld [vmem:[#allocation2 + $0x60] sm:$0xff]
    %v44 = vld [vmem:[#allocation2 + $0x68] sm:$0xff]
    %v45 = vld [vmem:[#allocation2 + $0x70] sm:$0xff]
    %v46 = vld [vmem:[#allocation2 + $0x78] sm:$0xff]
    %v47 = vld [vmem:[%s2] sm:$0x1]
    %v49 = vperm.slane %v47, 0
    %51 = vmatpush.msra.mxu0 %v46
    %52 = vmatpush.msra.mxu0 %v45
    %53 = vmatpush.msra.mxu0 %v44
    %54 = vmatpush.msra.mxu0 %v43
    %55 = vmatpush.msra.mxu0 %v42
    %56 = vmatpush.msra.mxu0 %v41
    %57 = vmatpush.msra.mxu0 %v40
    %58 = vmatpush.msra.mxu0 %v39
    %59 = vmatpush.msra.mxu0 %v38
    %60 = vmatpush.msra.mxu0 %v37
    %61 = vmatpush.msra.mxu0 %v36
    %62 = vmatpush.msra.mxu0 %v35
    %63 = vmatpush.msra.mxu0 %v34
    %64 = vmatpush.msra.mxu0 %v33
    %65 = vmatpush.msra.mxu0 %v32
    %66 = vmatpush.msra.mxu0 %v31
    %67 = vmatmul.f32.gmra.mxu0 %v30
    %v68 = vpop.f32.mrf.mxu0
    %v69 = vadd.f32 %v49, %v68
    %70 = vdwg.mxu0
    %v71 = vmax.f32 %v69, 0.0
    %v72 = vmin.f32 %v71, 6.0
    %v73 = vadd.f32 %v72, 3.0
    %v74 = vmul.f32 %v69, %v73
    %v75 = vmul.f32 %v74, 0.16666667
    %76 = vst [vmem:[#allocation4] sm:$0xff] %v75
    // Predicated region
    $region18: #{_linear_hswish_packed.1} parent=1 // pred_check
      _
    $region19: #{_linear_hswish_packed.1} parent=1 // pred_check_branch
      %78 = sbr.rel (0) target = $region21
    $region20: #{_linear_hswish_packed.1} parent=1 // pred_region
      // Predicated region
      $region22: #{_linear_hswish_packed.1} parent=20 // pred_check
        _
      $region23: #{_linear_hswish_packed.1} parent=20 // pred_check_branch
        %80 = sbr.rel (0) target = $region25
      $region24: #{_linear_hswish_packed.1} parent=20 // pred_region
        // Predicated region
        $region26: #{_linear_hswish_packed.1} parent=24 // pred_check
          _
        $region27: #{_linear_hswish_packed.1} parent=24 // pred_check_branch
          %82 = sbr.rel target = $region29
        $region28: #{_linear_hswish_packed.1} parent=24 // pred_region
          // Predicated region
          $region41: #{_linear_hswish_packed.1} parent=28 // pred_check
            _
          $region42: #{_linear_hswish_packed.1} parent=28 // pred_check_branch
            %98 = sbr.rel (0) target = $region44
          $region43: #{_linear_hswish_packed.1} parent=28 // pred_region
            %s100 = ssub.s32 16, 1
            loop: start=0, step=1, limit=1
            $region45: #{_linear_hswish_packed.1} parent=43 // loop_pre_header
              _
            $region46: #{_linear_hswish_packed.1} parent=43 // loop_header
              %s102 = sphi 0, %s106
              %p103 = scmp.ge.s32.totalorder %s102, 1
              %s107 = sphi [#allocation4], [#allocation4]
              %s108 = sphi %s3, %s3
            $region47: #{_linear_hswish_packed.1} parent=43 // loop_header_branch
              %105 = sbr.rel (%p103) target = $region51
            $region48: #{_linear_hswish_packed.1} parent=43 // loop_body
              %v109 = vld [vmem:[%s107] sm:%s100]
              %110 = vst [vmem:[%s108] sm:%s100] %v109
            $region49: #{_linear_hswish_packed.1} parent=43 // loop_footer
              %s106 = sadd.s32 1, %s102
            $region50: #{_linear_hswish_packed.1} parent=43 // loop_footer_branch
              %101 = sbr.rel target = $region46
            $region51: #{_linear_hswish_packed.1} parent=43 // loop_exit
              _
          $region44: #{_linear_hswish_packed.1} parent=28 // pred_fallthru
            _
        $region29: #{_linear_hswish_packed.1} parent=24 // pred_fallthru
          _
        // Predicated region
        $region30: #{_linear_hswish_packed.1} parent=24 // pred_check
          _
        $region31: #{_linear_hswish_packed.1} parent=24 // pred_check_branch
          %84 = sbr.rel (0) target = $region33
        $region32: #{_linear_hswish_packed.1} parent=24 // pred_region
          %s86 = ssub.s32 16, 1
          loop: start=0, step=1, limit=1
          $region34: #{_linear_hswish_packed.1} parent=32 // loop_pre_header
            _
          $region35: #{_linear_hswish_packed.1} parent=32 // loop_header
            %s88 = sphi 0, %s92
            %p89 = scmp.ge.s32.totalorder %s88, 1
            %s93 = sphi [#allocation4], [#allocation4]
            %s94 = sphi %s3, %s3
          $region36: #{_linear_hswish_packed.1} parent=32 // loop_header_branch
            %91 = sbr.rel (%p89) target = $region40
          $region37: #{_linear_hswish_packed.1} parent=32 // loop_body
            %v95 = vld [vmem:[%s93] sm:%s86]
            %96 = vst [vmem:[%s94] sm:%s86] %v95
          $region38: #{_linear_hswish_packed.1} parent=32 // loop_footer
            %s92 = sadd.s32 1, %s88
          $region39: #{_linear_hswish_packed.1} parent=32 // loop_footer_branch
            %87 = sbr.rel target = $region35
          $region40: #{_linear_hswish_packed.1} parent=32 // loop_exit
            _
        $region33: #{_linear_hswish_packed.1} parent=24 // pred_fallthru
          _
      $region25: #{_linear_hswish_packed.1} parent=20 // pred_fallthru
        _
      %111 = vnop
    $region21: #{_linear_hswish_packed.1} parent=1 // pred_fallthru
      _
    // Predicated region
    $region52: #{_linear_hswish_packed.1} parent=1 // pred_check
      _
    $region53: #{_linear_hswish_packed.1} parent=1 // pred_check_branch
      %113 = sbr.rel (0) target = $region55
    $region54: #{_linear_hswish_packed.1} parent=1 // pred_region
      _
    $region55: #{_linear_hswish_packed.1} parent=1 // pred_fallthru
      _
    %114 = vsyncpa [#allocation3], 1

</llo_original>
